<compile_context>
chip_gen: v7x
topology: tpu7x:2x2x1
jax: 0.10.0
libtpu: 0.0.40
codegen_flags: <defaults>
</compile_context>

<pallas_src>
import math

import jax
import jax.numpy as jnp
from jax.experimental import pallas as pl
from jax.experimental.pallas import tpu as pltpu

_LANES = 128
_MAX_LANE_MULT = 32          # lane width capped at 32 * 128 = 4096
_MIB = 1024 * 1024


def _sigmoid_kernel(x_ref, o_ref):
    x = x_ref[...]
    if x.dtype in (jnp.float32, jnp.bfloat16):
        # Native compute (v6e/v7x EUP handles bf16). Single transcendental:
        # sigmoid(x) = 0.5 * tanh(0.5 * x) + 0.5   (one EUP push, no divide).
        half = jnp.asarray(0.5, dtype=x.dtype)
        o_ref[...] = half * jnp.tanh(half * x) + half
    else:
        xf = x.astype(jnp.float32)
        o_ref[...] = (0.5 * jnp.tanh(0.5 * xf) + 0.5).astype(o_ref.dtype)


def _pick_block_bytes() -> int:
    """Per-generation byte budget for one block (trace-time, zero runtime cost)."""
    try:
        info = pltpu.get_tpu_info()
        vmem = getattr(info, "vmem_capacity_bytes", None)
        if vmem is not None and vmem < 100 * _MIB:
            return 6 * _MIB          # v7x: 64 MiB physical VMEM
        return 8 * _MIB              # v5e/v6e: 128 MiB physical VMEM
    except Exception:
        return 6 * _MIB              # conservative default


def _choose_lane_width(total: int) -> int:
    """Widest multiple of 128 dividing `total`, capped at 4096 lanes."""
    m = total // _LANES
    best = 1
    for d in range(1, _MAX_LANE_MULT + 1):
        if m % d == 0:
            best = d
    return best * _LANES


def _sigmoid_aligned(flat: jax.Array) -> jax.Array:
    """Run the Pallas kernel on a flat array whose length is a multiple of 128."""
    total = flat.shape[0]
    dtype = flat.dtype
    itemsize = jnp.dtype(dtype).itemsize

    lane_w = _choose_lane_width(total)
    rows = total // lane_w
    x2d = flat.reshape(rows, lane_w)

    # Row tile from the byte budget; multiple of 32 rows so packed dtypes
    # (bf16/fp16/int8) also satisfy sublane minimums.
    block_bytes = _pick_block_bytes()
    block_elems = max(1, block_bytes // itemsize)
    tr = max(32, (block_elems // lane_w) // 32 * 32)
    if rows <= tr:
        if rows >= 64:
            # Keep >= 2 grid steps: enables software pipelining and v7x
            # megacore sharding instead of a single serialized block.
            tr = max(32, (pl.cdiv(rows, 2) // 32) * 32)
        else:
            tr = rows                # single block == full array dims (valid)
    tr = min(tr, rows)
    grid = (pl.cdiv(rows, tr),)      # ragged last block masked by Pallas

    # Double-buffered in + out = 4x block; give explicit headroom so the
    # scoped-VMEM default (16 MiB v5e / 32 MiB v6e,v7x) never shrinks the window.
    block_bytes_actual = tr * lane_w * itemsize
    vmem_limit = int(min(48 * _MIB, max(32 * _MIB, 4 * block_bytes_actual + 8 * _MIB)))

    out2d = pl.pallas_call(
        _sigmoid_kernel,
        out_shape=jax.ShapeDtypeStruct((rows, lane_w), dtype),
        grid=grid,
        in_specs=[pl.BlockSpec((tr, lane_w), lambda i: (i, 0))],
        out_specs=pl.BlockSpec((tr, lane_w), lambda i: (i, 0)),
        compiler_params=pltpu.CompilerParams(
            dimension_semantics=("parallel",),
            vmem_limit_bytes=vmem_limit),
    )(x2d)
    return out2d.reshape(-1)


def my_sigmoid(x: jax.Array, param=None) -> jax.Array:
    """Pallas TPU implementation of MySigmoid.forward(x) == sigmoid(x).

    `param` mirrors the PyTorch module's parameter; forward() never uses it
    (it only matters for ONNX export), so it is not routed into the kernel.
    """
    del param  # unused, exactly as in MySigmoidImpl.forward
    if not jnp.issubdtype(x.dtype, jnp.floating):
        raise TypeError(f"my_sigmoid requires a floating dtype, got {x.dtype}")

    orig_shape = x.shape
    total = math.prod(orig_shape) if orig_shape else 1
    flat = x.reshape(-1)

    aligned = (total // _LANES) * _LANES
    if aligned == total:
        # Common path: no padding, no extra copies.
        out_flat = _sigmoid_aligned(flat)
    elif aligned == 0:
        # Tiny array (< 128 elements): not worth a kernel launch.
        out_flat = jax.nn.sigmoid(flat)
    else:
        # Ragged: stream the 128-aligned head through the kernel, handle the
        # <128-element tail outside (avoids a full-array pad copy).
        head = _sigmoid_aligned(flat[:aligned])
        tail = jax.nn.sigmoid(flat[aligned:])
        out_flat = jnp.concatenate([head, tail])

    return out_flat.reshape(orig_shape)


class MySigmoid:
    """JAX mirror of the PyTorch MySigmoid module."""

    def __init__(self, n: int):
        # nn.parameter.Parameter(torch.arange(n).float()) — unused in forward.
        self.param = jnp.arange(n, dtype=jnp.float32)

    def __call__(self, x: jax.Array) -> jax.Array:
        return my_sigmoid(x, self.param)


if __name__ == "__main__":
    key = jax.random.PRNGKey(0)
    # Small NCHW input: batch=2, channels=4, spatial=16x16
    x = jax.random.normal(key, (2, 4, 16, 16), dtype=jnp.float32)

    module = MySigmoid(n=4)
    out = module(x)
    out = jax.block_until_ready(out)

    # Reference check against plain-JAX sigmoid (tanh form is mathematically
    # identical; allow small f32 rounding differences).
    ref = jax.nn.sigmoid(x)
    assert out.shape == x.shape and out.dtype == x.dtype
    assert jnp.max(jnp.abs(out - ref)) < 1e-5

    print("KERNEL_OK")
</pallas_src>

<mosaic_0001>
module attributes {stable_mosaic.version = 11 : i64} {
  func.func @_sigmoid_kernel(%arg0: i32, %arg1: memref<1x2048xf32, #tpu.memory_space<vmem>>, %arg2: memref<1x2048xf32, #tpu.memory_space<vmem>>) attributes {dimension_semantics = [#tpu.dimension_semantics<parallel>], iteration_bounds = array<i64: 1>, scalar_prefetch = 0 : i64, scratch_operands = 0 : i64, tpu.core_type = #tpu.core_type<tc>, window_params = [{transform_indices = @transform_0, window_bounds = array<i64: 1, 2048>}, {transform_indices = @transform_1, window_bounds = array<i64: 1, 2048>}]} {
    %c0 = arith.constant 0 : index
    %c0_0 = arith.constant 0 : index
    %0 = vector.load %arg1[%c0, %c0_0] : memref<1x2048xf32, #tpu.memory_space<vmem>>, vector<1x2048xf32>
    %cst = arith.constant 5.000000e-01 : f32
    %1 = vector.broadcast %cst : f32 to vector<1x2048xf32>
    %2 = arith.mulf %1, %0 : vector<1x2048xf32>
    %3 = math.tanh %2 : vector<1x2048xf32>
    %cst_1 = arith.constant 5.000000e-01 : f32
    %4 = vector.broadcast %cst_1 : f32 to vector<1x2048xf32>
    %5 = arith.mulf %4, %3 : vector<1x2048xf32>
    %cst_2 = arith.constant 5.000000e-01 : f32
    %6 = vector.broadcast %cst_2 : f32 to vector<1x2048xf32>
    %7 = arith.addf %5, %6 : vector<1x2048xf32>
    %c0_3 = arith.constant 0 : index
    %c0_4 = arith.constant 0 : index
    %8 = vector.load %arg2[%c0_3, %c0_4] : memref<1x2048xf32, #tpu.memory_space<vmem>>, vector<1x2048xf32>
    tpu.vector_store %arg2[%c0_3, %c0_4], %7 {strides = array<i32>} : memref<1x2048xf32, #tpu.memory_space<vmem>>, vector<1x2048xf32>,
    return
  }
  func.func @transform_0(%arg0: i32) -> (i32, i32) {
    %c0_i32 = arith.constant 0 : i32
    %c0_i32_0 = arith.constant 0 : i32
    return %arg0, %c0_i32 : i32, i32
  }
  func.func @transform_1(%arg0: i32) -> (i32, i32) {
    %c0_i32 = arith.constant 0 : i32
    %c0_i32_0 = arith.constant 0 : i32
    return %arg0, %c0_i32 : i32, i32
  }
}

</mosaic_0001>

<llo_original>
// kernel: tpu_custom_call.1
$region0: #{tpu_custom_call.1}
  #allocation0 [shape = 'u32[]', space=smem, size = 0x4, offset = 0x4, fixed_abs, tag = 'smem constant byte address 0x4 - core index']
  #allocation1 [shape = 'u32[144,128]{1,0:T(1,128)}', space=vmem, size = 0x12000, scoped, tag = 'internal scratch']
  %s0 = inlined_call_operand.hbm [shape: f32[1,2048], index: 0, kind: input, shape index: {}]
  %s1 = inlined_call_operand.hbm [shape: f32[1,2048], index: 1, kind: output, shape index: {}]
  %s2 = sld [smem:[#allocation0]]
  $region18: #{tpu_custom_call.1} parent=0
    _
  %s4 = ssub.s32 1, %s2
  %s5 = scalar_select 0, %s4, %s2
  $region1: #{tpu_custom_call.1} parent=0
    #allocation2 [shape = 'u8[8192]{0}', space=vmem, size = 0x2000, scoped, tag = 'input window, operand 0, single buffered']
    #allocation3 [shape = 's32[1]{0}', space=sflag, size = 0x4, scoped, tag = 'scoped memory for tpu_custom_call.1']
    #allocation4 [shape = 's32[1]{0}', space=sflag, size = 0x4, scoped, tag = 'scoped memory for tpu_custom_call.1']
    #allocation5 [shape = 'u8[8192]{0}', space=vmem, size = 0x2000, scoped, tag = 'output window, operand 0, single buffered']
    %6 = vsyncpa [#allocation3], 0
    %7 = vsyncpa [#allocation4], 0
    // Predicated region
    $region2: #{tpu_custom_call.1} parent=1 // pred_check
      _
    $region3: #{tpu_custom_call.1} parent=1 // pred_check_branch
      %9 = sbr.rel (0) target = $region5
    $region4: #{tpu_custom_call.1} parent=1 // pred_region
      %s11 = ssub.s32 256, 256
      %12 = vsyncadd [#allocation3], %s11
      %s14 = sshll.u32 [#allocation2], 4
      %s15 = int_to_ptr.vmem [resolvable:$true] %s14
      %17 = dma.hbm_to_vmem [thread:$0]  %s0, 256, %s15, [#allocation3]
    $region5: #{tpu_custom_call.1} parent=1 // pred_fallthru
      _
    // Predicated region
    $region6: #{tpu_custom_call.1} parent=1 // pred_check
      _
    $region7: #{tpu_custom_call.1} parent=1 // pred_check_branch
      %19 = sbr.rel (0) target = $region9
    $region8: #{tpu_custom_call.1} parent=1 // pred_region
      %20 = dma.done [#allocation3], 256
    $region9: #{tpu_custom_call.1} parent=1 // pred_fallthru
      _
    %v21 = vld [vmem:[#allocation2] sm:$0xff]
    %v22 = vld [vmem:[#allocation2 + $0x8] sm:$0xff]
    %v23 = vmul.f32 %v21, 0.5
    %v24 = vmul.f32 %v22, 0.5
    %v25 = vtanh.pop %v23
    %v26 = vtanh.pop %v24
    %v27 = vmul.f32 %v25, 0.5
    %v28 = vmul.f32 %v26, 0.5
    %v29 = vadd.f32 %v27, 0.5
    %v30 = vadd.f32 %v28, 0.5
    %31 = vst [vmem:[#allocation5] sm:$0xff] %v29
    %32 = vst [vmem:[#allocation5 + $0x8] sm:$0xff] %v30
    // Predicated region
    $region10: #{tpu_custom_call.1} parent=1 // pred_check
      _
    $region11: #{tpu_custom_call.1} parent=1 // pred_check_branch
      %34 = sbr.rel (0) target = $region13
    $region12: #{tpu_custom_call.1} parent=1 // pred_region
      %s36 = ssub.s32 256, 256
      %37 = vsyncadd [#allocation4], %s36
      %s39 = sshll.u32 [#allocation5], 4
      %s40 = int_to_ptr.vmem [resolvable:$true] %s39
      %42 = dma.vmem_to_hbm [thread:$0]  %s40, 256, %s1, [#allocation4]
    $region13: #{tpu_custom_call.1} parent=1 // pred_fallthru
      _
    // Predicated region
    $region14: #{tpu_custom_call.1} parent=1 // pred_check
      _
    $region15: #{tpu_custom_call.1} parent=1 // pred_check_branch
      %44 = sbr.rel (0) target = $region17
    $region16: #{tpu_custom_call.1} parent=1 // pred_region
      %45 = dma.done [#allocation4], 256
    $region17: #{tpu_custom_call.1} parent=1 // pred_fallthru
      _
    %46 = vsyncpa [#allocation3], 1
    %47 = vsyncpa [#allocation4], 1

</llo_original>
